<compile_context>
chip_gen: v6e
topology: v6e:2x2x1
jax: 0.10.0
libtpu: 0.0.40
codegen_flags: <defaults>
</compile_context>

<pallas_src>
import jax
import jax.numpy as jnp
from jax.experimental import pallas as pl
from jax.experimental.pallas import tpu as pltpu

LANE = 128  # TPU lane width; fused output dim is padded to a multiple of this


def _fused_forward_kernel(q_ref, w_ref, b_ref, o_ref):
    # One decode step: logits = q @ Wf + bf  ->  softmax over the lane axis.
    # q_ref: (B, d)   w_ref: (d, Rp)   b_ref: (1, Rp)   o_ref: (B, Rp)
    logits = jnp.dot(q_ref[...], w_ref[...],
                     preferred_element_type=jnp.float32) + b_ref[...]
    m = jnp.max(logits, axis=-1, keepdims=True)
    p = jnp.exp(logits - m)                  # padded cols (bias=-1e30) -> exp == 0
    denom = jnp.sum(p, axis=-1, keepdims=True)
    # Exact divide (not approx reciprocal): rows sum to 1.0 within f32 rounding.
    o_ref[...] = (p / denom).astype(o_ref.dtype)


def make_fused_params(D, e, Lw, Lb):
    """One-time parameter fusion + lane padding, amortized over all decode steps.

    logits = Lw @ (D @ q + e) + Lb  ==  q @ Wf + bf
      Wf = (Lw @ D)^T : (d, R)
      bf = Lw @ e + Lb : (R,)
    Padded to Rp = ceil(R/128)*128 so every output store is lane-dense
    (pad weight cols = 0, pad bias = -1e30 so softmax zeroes them exactly).
    """
    Wf = jnp.asarray(Lw @ D, dtype=jnp.float32).T        # (d, R)
    bf = jnp.asarray(Lw @ e + Lb, dtype=jnp.float32)     # (R,)
    d, R = Wf.shape
    Rp = ((R + LANE - 1) // LANE) * LANE
    Wp = jnp.zeros((d, Rp), jnp.float32).at[:, :R].set(Wf)
    bp = jnp.full((1, Rp), -1e30, jnp.float32).at[0, :R].set(bf)
    return Wp, bp, R


def model_forward(q, Wp, bp, R):
    """Fused classifier head for one or many decode steps.

    q : [d] | [B, d] | [T, B, d]  hidden state(s)
    returns probabilities of shape [R] | [B, R] | [T, B, R].

    All T steps run in one pallas_call with grid=(T,); the fused weight/bias
    stay VMEM-resident across the whole grid.
    """
    orig_ndim = q.ndim
    q3 = jnp.asarray(q, jnp.float32)
    if orig_ndim == 1:
        q3 = q3[None, None, :]
    elif orig_ndim == 2:
        q3 = q3[None, :, :]
    T, B, d = q3.shape
    Rp = Wp.shape[1]

    out = pl.pallas_call(
        _fused_forward_kernel,
        out_shape=jax.ShapeDtypeStruct((T, B, Rp), jnp.float32),
        grid=(T,),
        in_specs=[
            pl.BlockSpec((None, B, d), lambda t: (t, 0, 0)),   # q_t tile (B, d)
            pl.BlockSpec((d, Rp), lambda t: (0, 0)),           # fused W, resident
            pl.BlockSpec((1, Rp), lambda t: (0, 0)),           # fused bias, resident
        ],
        out_specs=pl.BlockSpec((None, B, Rp), lambda t: (t, 0, 0)),
        compiler_params=pltpu.CompilerParams(
            dimension_semantics=("arbitrary",)),
    )(q3, Wp, bp)

    out = out[..., :R]                       # drop lane padding outside the kernel
    if orig_ndim == 1:
        return out[0, 0]
    if orig_ndim == 2:
        return out[0]
    return out


if __name__ == "__main__":
    # Small shapes consistent with the module: hidden d, vocab V, response vocab R.
    d, V, R = 32, 64, 16
    T, B = 8, 16                             # decode steps x decode streams

    key = jax.random.PRNGKey(0)
    k_q, k_D, k_e, k_Lw, k_Lb, k_Q = jax.random.split(key, 6)

    # Deterministic parameter init (std=0.01 like the module).
    q = 0.01 * jax.random.normal(k_q, (d,), dtype=jnp.float32)
    D = 0.01 * jax.random.normal(k_D, (V, d), dtype=jnp.float32)
    e = 0.01 * jax.random.normal(k_e, (V,), dtype=jnp.float32)
    Lw = 0.01 * jax.random.normal(k_Lw, (R, V), dtype=jnp.float32)
    Lb = 0.01 * jax.random.normal(k_Lb, (R,), dtype=jnp.float32)

    # One-time fusion + lane padding of parameters (outside the per-step call).
    Wp, bp, R_out = make_fused_params(D, e, Lw, Lb)

    # ---- single step (matches Model.forward(q)) ----
    probs = jax.block_until_ready(model_forward(q, Wp, bp, R_out))
    ref = jax.nn.softmax(Lw @ (D @ q + e) + Lb)
    assert probs.shape == (R,)
    assert jnp.allclose(probs, ref, atol=1e-4, rtol=1e-3)
    assert jnp.allclose(jnp.sum(probs), 1.0, atol=1e-5)   # exact normalization

    # ---- fused decode loop: T steps x B streams in ONE pallas_call ----
    Q = 0.01 * jax.random.normal(k_Q, (T, B, d), dtype=jnp.float32)
    probs_tb = jax.block_until_ready(model_forward(Q, Wp, bp, R_out))
    logits_ref = jnp.einsum('tbd,vd->tbv', Q, D) + e
    ref_tb = jax.nn.softmax(jnp.einsum('tbv,rv->tbr', logits_ref, Lw) + Lb, axis=-1)
    assert probs_tb.shape == (T, B, R)
    assert jnp.allclose(probs_tb, ref_tb, atol=1e-4, rtol=1e-3)
    assert jnp.allclose(jnp.sum(probs_tb, axis=-1), 1.0, atol=1e-5)

    print("KERNEL_OK")
</pallas_src>

<mosaic_0001>
module attributes {stable_mosaic.version = 11 : i64} {
  func.func @_fused_forward_kernel(%arg0: i32, %arg1: memref<1x1x32xf32, #tpu.memory_space<vmem>>, %arg2: memref<32x128xf32, #tpu.memory_space<vmem>>, %arg3: memref<1x128xf32, #tpu.memory_space<vmem>>, %arg4: memref<1x1x128xf32, #tpu.memory_space<vmem>>) attributes {dimension_semantics = [#tpu.dimension_semantics<arbitrary>], iteration_bounds = array<i64: 1>, scalar_prefetch = 0 : i64, scratch_operands = 0 : i64, tpu.core_type = #tpu.core_type<tc>, window_params = [{transform_indices = @transform_0, window_bounds = array<i64: 1, 1, 32>}, {pipeline_mode = #tpu.pipeline_mode<synchronous>, transform_indices = @transform_1, window_bounds = array<i64: 32, 128>}, {pipeline_mode = #tpu.pipeline_mode<synchronous>, transform_indices = @transform_2, window_bounds = array<i64: 1, 128>}, {transform_indices = @transform_3, window_bounds = array<i64: 1, 1, 128>}]} {
    %c0 = arith.constant 0 : index
    %c0_0 = arith.constant 0 : index
    %c0_1 = arith.constant 0 : index
    %0 = vector.load %arg1[%c0, %c0_0, %c0_1] : memref<1x1x32xf32, #tpu.memory_space<vmem>>, vector<1x1x32xf32>
    %1 = vector.shape_cast %0 : vector<1x1x32xf32> to vector<1x32xf32>
    %c0_2 = arith.constant 0 : index
    %c0_3 = arith.constant 0 : index
    %2 = vector.load %arg2[%c0_2, %c0_3] : memref<32x128xf32, #tpu.memory_space<vmem>>, vector<32x128xf32>
    %cst = arith.constant dense<0.000000e+00> : vector<1x128xf32>
    %3 = tpu.matmul %1, %2, %cst {dimension_numbers = #tpu.dot_dimension_numbers<[1], [0], [0], [1], [0, 0, 1, 1], [], []>} : vector<1x32xf32>, vector<32x128xf32>, vector<1x128xf32> -> vector<1x128xf32>
    %c0_4 = arith.constant 0 : index
    %c0_5 = arith.constant 0 : index
    %4 = vector.load %arg3[%c0_4, %c0_5] : memref<1x128xf32, #tpu.memory_space<vmem>>, vector<1x128xf32>
    %5 = arith.addf %3, %4 : vector<1x128xf32>
    %cst_6 = arith.constant dense<0xFF800000> : vector<1xf32>
    %6 = vector.multi_reduction <maximumf>, %5, %cst_6 [1] : vector<1x128xf32> to vector<1xf32>
    %7 = vector.shape_cast %6 : vector<1xf32> to vector<1x1xf32>
    %8 = vector.broadcast %7 : vector<1x1xf32> to vector<1x128xf32>
    %9 = arith.subf %5, %8 : vector<1x128xf32>
    %10 = math.exp %9 : vector<1x128xf32>
    %cst_7 = arith.constant dense<0.000000e+00> : vector<1xf32>
    %11 = vector.multi_reduction <add>, %10, %cst_7 [1] : vector<1x128xf32> to vector<1xf32>
    %12 = vector.shape_cast %11 : vector<1xf32> to vector<1x1xf32>
    %13 = vector.broadcast %12 : vector<1x1xf32> to vector<1x128xf32>
    %14 = arith.divf %10, %13 : vector<1x128xf32>
    %c0_8 = arith.constant 0 : index
    %c0_9 = arith.constant 0 : index
    %c0_10 = arith.constant 0 : index
    %15 = vector.load %arg4[%c0_8, %c0_9, %c0_10] : memref<1x1x128xf32, #tpu.memory_space<vmem>>, vector<1x1x128xf32>
    %16 = vector.shape_cast %15 : vector<1x1x128xf32> to vector<1x128xf32>
    %17 = vector.shape_cast %14 : vector<1x128xf32> to vector<1x1x128xf32>
    tpu.vector_store %arg4[%c0_8, %c0_9, %c0_10], %17 {strides = array<i32>} : memref<1x1x128xf32, #tpu.memory_space<vmem>>, vector<1x1x128xf32>,
    return
  }
  func.func @transform_0(%arg0: i32) -> (i32, i32, i32) {
    %c0_i32 = arith.constant 0 : i32
    %c0_i32_0 = arith.constant 0 : i32
    %c0_i32_1 = arith.constant 0 : i32
    return %arg0, %c0_i32, %c0_i32_0 : i32, i32, i32
  }
  func.func @transform_1(%arg0: i32) -> (i32, i32) {
    %c0_i32 = arith.constant 0 : i32
    %c0_i32_0 = arith.constant 0 : i32
    %c0_i32_1 = arith.constant 0 : i32
    return %c0_i32, %c0_i32_0 : i32, i32
  }
  func.func @transform_2(%arg0: i32) -> (i32, i32) {
    %c0_i32 = arith.constant 0 : i32
    %c0_i32_0 = arith.constant 0 : i32
    %c0_i32_1 = arith.constant 0 : i32
    return %c0_i32, %c0_i32_0 : i32, i32
  }
  func.func @transform_3(%arg0: i32) -> (i32, i32, i32) {
    %c0_i32 = arith.constant 0 : i32
    %c0_i32_0 = arith.constant 0 : i32
    %c0_i32_1 = arith.constant 0 : i32
    return %arg0, %c0_i32, %c0_i32_0 : i32, i32, i32
  }
}

</mosaic_0001>

<llo_original>
// kernel: tpu_custom_call.1
$region0: #{tpu_custom_call.1}
  #allocation0 [shape = 'u32[]', space=smem, size = 0x4, offset = 0x4, fixed_abs, tag = 'smem constant byte address 0x4 - core index']
  #allocation1 [shape = 'u32[144,128]{1,0:T(1,128)}', space=vmem, size = 0x12000, scoped, tag = 'internal scratch']
  %s0 = inlined_call_operand.hbm [shape: f32[1,1,32], index: 0, kind: input, shape index: {}]
  %s1 = inlined_call_operand.hbm [shape: f32[32,128], index: 1, kind: input, shape index: {}]
  %s2 = inlined_call_operand.vmem [shape: f32[1,128], index: 2, kind: input, shape index: {}]
  %s3 = inlined_call_operand.hbm [shape: f32[1,1,128], index: 3, kind: output, shape index: {}]
  %s4 = sld [smem:[#allocation0]]
  $region30: #{tpu_custom_call.1} parent=0
    _
  %s6 = ssub.s32 1, %s4
  %s7 = scalar_select 0, %s6, %s4
  $region1: #{tpu_custom_call.1} parent=0
    #allocation2 [shape = 'u8[512]{0}', space=vmem, size = 0x400, scoped, tag = 'input window, operand 0, single buffered']
    #allocation3 [shape = 's32[1]{0}', space=sflag, size = 0x4, scoped, tag = 'scoped memory for tpu_custom_call.1']
    #allocation4 [shape = 's32[1]{0}', space=sflag, size = 0x4, scoped, tag = 'scoped memory for tpu_custom_call.1']
    #allocation5 [shape = 'u8[16384]{0}', space=vmem, size = 0x4000, scoped, tag = 'input window, operand 1, single buffered']
    #allocation6 [shape = 's32[1]{0}', space=sflag, size = 0x4, scoped, tag = 'scoped memory for tpu_custom_call.1']
    #allocation7 [shape = 'u8[512]{0}', space=vmem, size = 0x400, scoped, tag = 'output window, operand 0, single buffered']
    %8 = vsyncpa [#allocation3], 0
    %9 = vsyncpa [#allocation6], 0
    %10 = vsyncpa [#allocation4], 0
    // Predicated region
    $region2: #{tpu_custom_call.1} parent=1 // pred_check
      _
    $region3: #{tpu_custom_call.1} parent=1 // pred_check_branch
      %12 = sbr.rel (0) target = $region5
    $region4: #{tpu_custom_call.1} parent=1 // pred_region
      %s14 = ssub.s32 16, 16
      %15 = vsyncadd [#allocation3], %s14
      %s17 = sshll.u32 [#allocation2], 4
      %s18 = int_to_ptr.vmem [resolvable:$true] %s17
      %20 = dma.hbm_to_vmem [thread:$0]  %s0, 16, %s18, [#allocation3]
    $region5: #{tpu_custom_call.1} parent=1 // pred_fallthru
      _
    // Predicated region
    $region6: #{tpu_custom_call.1} parent=1 // pred_check
      _
    $region7: #{tpu_custom_call.1} parent=1 // pred_check_branch
      %22 = sbr.rel (0) target = $region9
    $region8: #{tpu_custom_call.1} parent=1 // pred_region
      %s24 = ssub.s32 512, 512
      %25 = vsyncadd [#allocation6], %s24
      %s26 = sshll.u32 [#allocation5], 4
      %s27 = int_to_ptr.vmem [resolvable:$true] %s26
      %32 = dma.hbm_to_vmem [thread:$0]  %s1, 512, %s27, [#allocation6], 128, 128, 8
    $region9: #{tpu_custom_call.1} parent=1 // pred_fallthru
      _
    // Predicated region
    $region10: #{tpu_custom_call.1} parent=1 // pred_check
      _
    $region11: #{tpu_custom_call.1} parent=1 // pred_check_branch
      %34 = sbr.rel (0) target = $region13
    $region12: #{tpu_custom_call.1} parent=1 // pred_region
      _
    $region13: #{tpu_custom_call.1} parent=1 // pred_fallthru
      _
    // Predicated region
    $region14: #{tpu_custom_call.1} parent=1 // pred_check
      _
    $region15: #{tpu_custom_call.1} parent=1 // pred_check_branch
      %36 = sbr.rel (0) target = $region17
    $region16: #{tpu_custom_call.1} parent=1 // pred_region
      %37 = dma.done [#allocation3], 16
    $region17: #{tpu_custom_call.1} parent=1 // pred_fallthru
      _
    // Predicated region
    $region18: #{tpu_custom_call.1} parent=1 // pred_check
      _
    $region19: #{tpu_custom_call.1} parent=1 // pred_check_branch
      %39 = sbr.rel (0) target = $region21
    $region20: #{tpu_custom_call.1} parent=1 // pred_region
      %40 = dma.done [#allocation6], 512
    $region21: #{tpu_custom_call.1} parent=1 // pred_fallthru
      _
    %v41 = vld [vmem:[#allocation2] sm:$0x1]
    %v42 = vld [vmem:[#allocation5] sm:$0xff]
    %v43 = vld [vmem:[#allocation5 + $0x8] sm:$0xff]
    %v44 = vld [vmem:[#allocation5 + $0x10] sm:$0xff]
    %v45 = vld [vmem:[#allocation5 + $0x18] sm:$0xff]
    %v46 = vld [vmem:[%s2] sm:$0x1]
    %vm47 = vcmask 261120
    %v49 = vsel %vm47, %v41, 0
    %51 = vmatprep.subr.mxu0 0.0
    %52 = vmatpush1.msra.mxu0 0.0
    %53 = vmatprep.subr.mxu0 0.0
    %54 = vmatpush1.msra.mxu0 0.0
    %55 = vmatprep.subr.mxu0 0.0
    %56 = vmatpush1.msra.mxu0 0.0
    %57 = vmatprep.subr.mxu0 0.0
    %58 = vmatpush1.msra.mxu0 0.0
    %59 = vmatprep.subr.mxu0 0.0
    %60 = vmatpush1.msra.mxu0 0.0
    %61 = vmatprep.subr.mxu0 0.0
    %62 = vmatpush1.msra.mxu0 0.0
    %63 = vmatprep.subr.mxu0 0.0
    %64 = vmatpush1.msra.mxu0 0.0
    %65 = vmatprep.subr.mxu0 0.0
    %66 = vmatpush1.msra.mxu0 0.0
    %67 = vmatprep.subr.mxu0 0.0
    %68 = vmatpush1.msra.mxu0 0.0
    %69 = vmatprep.subr.mxu0 0.0
    %70 = vmatpush1.msra.mxu0 0.0
    %71 = vmatprep.subr.mxu0 0.0
    %72 = vmatpush1.msra.mxu0 0.0
    %73 = vmatprep.subr.mxu0 0.0
    %74 = vmatpush1.msra.mxu0 0.0
    %75 = vmatprep.subr.mxu0 0.0
    %76 = vmatpush1.msra.mxu0 %v45
    %77 = vmatprep.subr.mxu0 0.0
    %78 = vmatpush1.msra.mxu0 %v44
    %79 = vmatprep.subr.mxu0 0.0
    %80 = vmatpush1.msra.mxu0 %v43
    %81 = vmatprep.subr.mxu0 0.0
    %82 = vmatpush1.msra.mxu0 %v42
    %83 = vmatprep.subr.mxu0 0.0
    %84 = vmatpush2.msra.mxu0 0.0
    %85 = vmatprep.subr.mxu0 0.0
    %86 = vmatpush2.msra.mxu0 0.0
    %87 = vmatprep.subr.mxu0 0.0
    %88 = vmatpush2.msra.mxu0 0.0
    %89 = vmatprep.subr.mxu0 0.0
    %90 = vmatpush2.msra.mxu0 0.0
    %91 = vmatprep.subr.mxu0 0.0
    %92 = vmatpush2.msra.mxu0 0.0
    %93 = vmatprep.subr.mxu0 0.0
    %94 = vmatpush2.msra.mxu0 0.0
    %95 = vmatprep.subr.mxu0 0.0
    %96 = vmatpush2.msra.mxu0 0.0
    %97 = vmatprep.subr.mxu0 0.0
    %98 = vmatpush2.msra.mxu0 0.0
    %99 = vmatprep.subr.mxu0 0.0
    %100 = vmatpush2.msra.mxu0 0.0
    %101 = vmatprep.subr.mxu0 0.0
    %102 = vmatpush2.msra.mxu0 0.0
    %103 = vmatprep.subr.mxu0 0.0
    %104 = vmatpush2.msra.mxu0 0.0
    %105 = vmatprep.subr.mxu0 0.0
    %106 = vmatpush2.msra.mxu0 0.0
    %107 = vmatprep.subr.mxu0 0.0
    %108 = vmatpush2.msra.mxu0 0.0
    %109 = vmatprep.subr.mxu0 0.0
    %110 = vmatpush2.msra.mxu0 0.0
    %111 = vmatprep.subr.mxu0 0.0
    %112 = vmatpush2.msra.mxu0 0.0
    %113 = vmatprep.subr.mxu0 0.0
    %114 = vmatpush2.msra.mxu0 0.0
    %115 = vmatprep.mubr.f32.mxu0 0.0
    %116 = vmatmul.mubr.f32.gmra.mxu0 %v49
    %v117 = vpop.f32.mrf.mxu0
    %v118 = vadd.f32 %v46, %v117
    %v119 = vpop.f32.mrf.mxu0
    %120 = vdwg.mxu0
    %vm121 = vcmask 1040384
    %v122 = vsel %vm121, %v118, -inf
    %123 = vmax.xlane.f32.xlu0 %v122
    %v124 = vpop.xlane.xlu0 %123
    %v125 = vsub.f32 %v118, %v124
    %v126 = vmul.f32 %v125, 1.442695
    %v127 = vpow.pop %v126
    %v128 = vsel %vm121, %v127, 0.0
    %129 = vadd.xlane.f32.xlu0 %v128
    %v130 = vpop.xlane.xlu0 %129
    %v131 = vrcp.pop %v130
    %v132 = vmul.f32 %v127, %v131
    %133 = vst [vmem:[#allocation7] sm:$0x1] %v132
    // Predicated region
    $region22: #{tpu_custom_call.1} parent=1 // pred_check
      _
    $region23: #{tpu_custom_call.1} parent=1 // pred_check_branch
      %135 = sbr.rel (0) target = $region25
    $region24: #{tpu_custom_call.1} parent=1 // pred_region
      %s137 = ssub.s32 16, 16
      %138 = vsyncadd [#allocation4], %s137
      %s140 = sshll.u32 [#allocation7], 4
      %s141 = int_to_ptr.vmem [resolvable:$true] %s140
      %143 = dma.vmem_to_hbm [thread:$0]  %s141, 16, %s3, [#allocation4]
    $region25: #{tpu_custom_call.1} parent=1 // pred_fallthru
      _
    // Predicated region
    $region26: #{tpu_custom_call.1} parent=1 // pred_check
      _
    $region27: #{tpu_custom_call.1} parent=1 // pred_check_branch
      %145 = sbr.rel (0) target = $region29
    $region28: #{tpu_custom_call.1} parent=1 // pred_region
      %146 = dma.done [#allocation4], 16
    $region29: #{tpu_custom_call.1} parent=1 // pred_fallthru
      _
    %147 = vsyncpa [#allocation3], 1
    %148 = vsyncpa [#allocation6], 1
    %149 = vsyncpa [#allocation4], 1

</llo_original>
